<compile_context>
chip_gen: v7x
topology: tpu7x:2x2x1
jax: 0.10.0
libtpu: 0.0.40
codegen_flags: <defaults>
</compile_context>

<pallas_src>
import functools

import jax
import jax.numpy as jnp
from jax import lax
from jax.experimental import pallas as pl
from jax.experimental.pallas import tpu as pltpu

_LANE = 128


def _round_up(x, m):
    return ((x + m - 1) // m) * m


def pointwise_vaml_kernel(obs_ref, pred_ref, w1t_ref, b1_ref, w2_ref, out_ref):
    # obs_ref : [TB, D]        pred_ref: [S, TB, D]
    # w1t_ref : [H, D]   (pre-transposed first layer weight)
    # b1_ref  : [H, 1]   (column form of first-layer bias)
    # w2_ref  : [H, 1]   (column form of the H->1 projection; b2 cancels and is dropped)
    # out_ref : [1, TB]  (lane-dense: batch on lanes)
    S = pred_ref.shape[0]

    w1t = w1t_ref[...]          # [H, D]
    b1 = b1_ref[...]            # [H, 1], f32
    w2 = w2_ref[...]            # [H, 1], f32

    def hidden_T(x):
        # x: [N, D] -> tanh(x @ W1 + b1)^T laid out lane-dense as [H, N] (f32).
        # A @ B.T pattern on the MXU; f32 accumulate even for bf16 inputs.
        h = lax.dot_general(w1t, x, (((1,), (1,)), ((), ())),
                            preferred_element_type=jnp.float32)   # [H, N]
        return jnp.tanh(h + b1)

    # Target branch: V(obs) without b2 (it cancels in the difference).
    v_obs = jnp.sum(hidden_T(obs_ref[...]) * w2, axis=0, keepdims=True)   # [1, TB]

    # Model-sample branch: accumulate tanh'd hiddens across samples, reduce over H once.
    acc = hidden_T(pred_ref[0])                                           # [H, TB]
    if S <= 8:
        for s in range(1, S):                                             # static unroll
            acc = acc + hidden_T(pred_ref[s])
    else:
        acc = lax.fori_loop(1, S, lambda s, a: a + hidden_T(pred_ref[s]), acc)
    v_mean = jnp.sum(acc * w2, axis=0, keepdims=True) * (1.0 / S)         # [1, TB]

    out_ref[...] = 0.5 * (v_obs - v_mean) ** 2                            # lane-dense store


def _vmem_caps():
    """Generation-aware (budget, vmem_limit_cap) in bytes."""
    cap = None
    try:
        info = pltpu.get_tpu_info()
        cap = getattr(info, "vmem_capacity_bytes", None)
    except Exception:
        cap = None
    if not cap:
        cap = 64 << 20  # conservative default: assume v7x-sized VMEM
    cap = int(cap)
    budget = min(max(cap // 2 - (8 << 20), 16 << 20), 64 << 20)     # 56 MiB on 128 MiB parts, 24 MiB on v7x
    limit_cap = min((cap * 3) // 4, 96 << 20)                       # 96 MiB on 128 MiB parts, 48 MiB on v7x
    return budget, limit_cap


def _choose_tile(B, S, D, H, requested, itemsize):
    """Largest 128-multiple batch tile whose working set fits the per-generation VMEM budget,
    then capped so the grid keeps >=2 steps when the batch allows (v7x megacore)."""
    d_pad = _round_up(max(D, 1), _LANE)
    h_sub = _round_up(max(H, 1), 8)
    budget, limit_cap = _vmem_caps()

    def vmem_need(bt):
        io = 2 * itemsize * (S + 1) * bt * d_pad + 2 * 4 * 8 * bt        # double-buffered I/O blocks
        weights = 4 * (h_sub * d_pad + 2 * h_sub * _LANE)                # resident weight blocks (tiny)
        scratch = 4 * bt * (3 * h_sub + 4 * 8)                           # [H,bt] acc/temps + [1,bt] rows
        return io + weights + scratch

    bt = max(_LANE, _round_up(min(requested, _round_up(B, _LANE)), _LANE))
    while bt > _LANE and vmem_need(bt) > budget:
        bt -= _LANE
    # Keep >=2 grid steps when possible so dimension_semantics=("parallel",) can use
    # both v7x TensorCores (a single-step grid idles one TC).
    if B > _LANE:
        bt = max(_LANE, min(bt, _round_up(pl.cdiv(B, 2), _LANE)))

    need = vmem_need(bt)
    vmem_limit = int(min(max(2 * need + (8 << 20), 32 << 20), limit_cap))
    # TODO(synk): for very large S*D even bt=128 may not fit under limit_cap; in that
    # regime S should be chunked as a second ("arbitrary") grid axis with a VMEM accumulator.
    return bt, vmem_limit


def pointwise_vaml(obs, pred_obs, w1, b1, w2, b2=None, *, batch_tile=2048):
    del b2  # adds identically to V(obs) and every V(pred_s) -> cancels exactly in the difference
    B, D = obs.shape
    S = pred_obs.shape[0]
    H = w1.shape[1]
    assert S > 0 and pred_obs.shape[1] == B and pred_obs.shape[2] == D

    # Keep bf16 callers in bf16 (MXU-native, f32 accumulate); everything else runs f32.
    compute_dtype = jnp.bfloat16 if obs.dtype == jnp.dtype(jnp.bfloat16) else jnp.float32
    itemsize = jnp.dtype(compute_dtype).itemsize
    obs = obs.astype(compute_dtype)            # no-op when caller already matches
    pred_obs = pred_obs.astype(compute_dtype)

    w1t = jnp.asarray(w1, compute_dtype).T                    # [H, D] pre-transposed (tiny, one-time)
    b1_col = jnp.asarray(b1, jnp.float32).reshape(H, 1)       # column form
    w2_col = jnp.asarray(w2, jnp.float32).reshape(H, 1)       # column form

    bt, vmem_limit = _choose_tile(B, S, D, H, batch_tile, itemsize)
    Bp = _round_up(B, bt)
    if Bp != B:  # pad ragged batches; padded rows are sliced off after the kernel
        obs = jnp.pad(obs, ((0, Bp - B), (0, 0)))
        pred_obs = jnp.pad(pred_obs, ((0, 0), (0, Bp - B), (0, 0)))
    grid = (Bp // bt,)

    cost_est = pl.CostEstimate(
        flops=2 * (S + 1) * Bp * H * (D + 2),
        transcendentals=(S + 1) * Bp * H,
        bytes_accessed=itemsize * (S + 1) * Bp * D + 4 * (H * D + 2 * H + Bp),
    )

    out = pl.pallas_call(
        pointwise_vaml_kernel,
        out_shape=jax.ShapeDtypeStruct((1, Bp), jnp.float32),
        grid=grid,
        in_specs=[
            pl.BlockSpec((bt, D), lambda i: (i, 0)),           # obs tile, streamed
            pl.BlockSpec((S, bt, D), lambda i: (0, i, 0)),     # all samples for this tile
            # Tiny weights: constant index_map -> block stays resident, no per-step re-DMA.
            pl.BlockSpec((H, D), lambda i: (0, 0)),
            pl.BlockSpec((H, 1), lambda i: (0, 0)),
            pl.BlockSpec((H, 1), lambda i: (0, 0)),
        ],
        out_specs=pl.BlockSpec((1, bt), lambda i: (0, i)),     # lane-dense output slab
        compiler_params=pltpu.CompilerParams(
            dimension_semantics=("parallel",),
            vmem_limit_bytes=vmem_limit,
        ),
        cost_estimate=cost_est,
    )(obs, pred_obs, w1t, b1_col, w2_col)

    return out.reshape(Bp, 1)[:B]


class VAEstimatorPallas:
    """Pallas port of VAEstimator.

    The computable hot path is PointWiseVAML (value net + sample mean + squared error),
    which runs as a single Pallas kernel via `pointwise_costs`.
    """

    def __init__(self, value_params, samples: int):
        assert samples > 0
        self.value_params = value_params
        self.samples = samples

    def pointwise_costs(self, obs, pred_obs):
        w1, b1, w2, b2 = self.value_params
        return pointwise_vaml(obs, pred_obs, w1, b1, w2, b2)

    def forward(self, params, new_obs):
        # TODO(synk): VAEstimator.forward raises NotImplementedError in the reference
        # PyTorch module; nothing concrete to translate here.
        raise NotImplementedError


if __name__ == "__main__":
    B, D, H, S = 16, 16, 32, 4  # batch, obs_dim, hidden, model samples

    key = jax.random.PRNGKey(0)
    k_obs, k_pred, k_w1, k_b1, k_w2, k_b2 = jax.random.split(key, 6)

    obs = jax.random.normal(k_obs, (B, D), dtype=jnp.float32)
    pred_obs = jax.random.normal(k_pred, (S, B, D), dtype=jnp.float32)

    # Deterministic VValue parameters (PyTorch nn.Linear-style uniform init).
    lim1 = 1.0 / (D ** 0.5)
    lim2 = 1.0 / (H ** 0.5)
    w1 = jax.random.uniform(k_w1, (D, H), jnp.float32, -lim1, lim1)
    b1 = jax.random.uniform(k_b1, (1, H), jnp.float32, -lim1, lim1)
    w2 = jax.random.uniform(k_w2, (H, 1), jnp.float32, -lim2, lim2)
    b2 = jax.random.uniform(k_b2, (1, 1), jnp.float32, -lim2, lim2)

    est = VAEstimatorPallas((w1, b1, w2, b2), samples=S)
    out = jax.block_until_ready(est.pointwise_costs(obs, pred_obs))

    # Pure-JAX reference of PointWiseVAML semantics (b2 included; it cancels).
    def value_ref(x):
        return jnp.tanh(x @ w1 + b1) @ w2 + b2

    ref = 0.5 * (value_ref(obs) - value_ref(pred_obs).mean(axis=0)) ** 2
    assert out.shape == (B, 1)
    assert jnp.allclose(out, ref, atol=1e-5, rtol=1e-4)

    print("KERNEL_OK")
</pallas_src>

<mosaic_0001>
module attributes {stable_mosaic.version = 11 : i64} {
  func.func @pointwise_vaml_kernel(%arg0: i32, %arg1: memref<128x16xf32, #tpu.memory_space<vmem>>, %arg2: memref<4x128x16xf32, #tpu.memory_space<vmem>>, %arg3: memref<32x16xf32, #tpu.memory_space<vmem>>, %arg4: memref<32x1xf32, #tpu.memory_space<vmem>>, %arg5: memref<32x1xf32, #tpu.memory_space<vmem>>, %arg6: memref<1x128xf32, #tpu.memory_space<vmem>>) attributes {dimension_semantics = [#tpu.dimension_semantics<parallel>], iteration_bounds = array<i64: 1>, scalar_prefetch = 0 : i64, scratch_operands = 0 : i64, tpu.core_type = #tpu.core_type<tc>, window_params = [{transform_indices = @transform_0, window_bounds = array<i64: 128, 16>}, {transform_indices = @transform_1, window_bounds = array<i64: 4, 128, 16>}, {pipeline_mode = #tpu.pipeline_mode<synchronous>, transform_indices = @transform_2, window_bounds = array<i64: 32, 16>}, {pipeline_mode = #tpu.pipeline_mode<synchronous>, transform_indices = @transform_3, window_bounds = array<i64: 32, 1>}, {pipeline_mode = #tpu.pipeline_mode<synchronous>, transform_indices = @transform_4, window_bounds = array<i64: 32, 1>}, {transform_indices = @transform_5, window_bounds = array<i64: 1, 128>}]} {
    %c0 = arith.constant 0 : index
    %c0_0 = arith.constant 0 : index
    %0 = vector.load %arg3[%c0, %c0_0] : memref<32x16xf32, #tpu.memory_space<vmem>>, vector<32x16xf32>
    %c0_1 = arith.constant 0 : index
    %c0_2 = arith.constant 0 : index
    %1 = vector.load %arg4[%c0_1, %c0_2] : memref<32x1xf32, #tpu.memory_space<vmem>>, vector<32x1xf32>
    %c0_3 = arith.constant 0 : index
    %c0_4 = arith.constant 0 : index
    %2 = vector.load %arg5[%c0_3, %c0_4] : memref<32x1xf32, #tpu.memory_space<vmem>>, vector<32x1xf32>
    %c0_5 = arith.constant 0 : index
    %c0_6 = arith.constant 0 : index
    %3 = vector.load %arg1[%c0_5, %c0_6] : memref<128x16xf32, #tpu.memory_space<vmem>>, vector<128x16xf32>
    %cst = arith.constant dense<0.000000e+00> : vector<32x128xf32>
    %4 = tpu.matmul %0, %3, %cst {dimension_numbers = #tpu.dot_dimension_numbers<[1], [1], [0], [0], [0, 0, 1, 0], [], []>} : vector<32x16xf32>, vector<128x16xf32>, vector<32x128xf32> -> vector<32x128xf32>
    %5 = vector.broadcast %1 : vector<32x1xf32> to vector<32x128xf32>
    %6 = arith.addf %4, %5 : vector<32x128xf32>
    %7 = math.tanh %6 : vector<32x128xf32>
    %8 = vector.broadcast %2 : vector<32x1xf32> to vector<32x128xf32>
    %9 = arith.mulf %7, %8 : vector<32x128xf32>
    %cst_7 = arith.constant dense<0.000000e+00> : vector<128xf32>
    %10 = vector.multi_reduction <add>, %9, %cst_7 [0] : vector<32x128xf32> to vector<128xf32>
    %11 = vector.shape_cast %10 : vector<128xf32> to vector<1x128xf32>
    %c0_8 = arith.constant 0 : index
    %c0_9 = arith.constant 0 : index
    %c0_10 = arith.constant 0 : index
    %12 = vector.load %arg2[%c0_8, %c0_9, %c0_10] : memref<4x128x16xf32, #tpu.memory_space<vmem>>, vector<1x128x16xf32>
    %13 = vector.shape_cast %12 : vector<1x128x16xf32> to vector<128x16xf32>
    %cst_11 = arith.constant dense<0.000000e+00> : vector<32x128xf32>
    %14 = tpu.matmul %0, %13, %cst_11 {dimension_numbers = #tpu.dot_dimension_numbers<[1], [1], [0], [0], [0, 0, 1, 0], [], []>} : vector<32x16xf32>, vector<128x16xf32>, vector<32x128xf32> -> vector<32x128xf32>
    %15 = vector.broadcast %1 : vector<32x1xf32> to vector<32x128xf32>
    %16 = arith.addf %14, %15 : vector<32x128xf32>
    %17 = math.tanh %16 : vector<32x128xf32>
    %c1 = arith.constant 1 : index
    %c0_12 = arith.constant 0 : index
    %c0_13 = arith.constant 0 : index
    %18 = vector.load %arg2[%c1, %c0_12, %c0_13] : memref<4x128x16xf32, #tpu.memory_space<vmem>>, vector<1x128x16xf32>
    %19 = vector.shape_cast %18 : vector<1x128x16xf32> to vector<128x16xf32>
    %cst_14 = arith.constant dense<0.000000e+00> : vector<32x128xf32>
    %20 = tpu.matmul %0, %19, %cst_14 {dimension_numbers = #tpu.dot_dimension_numbers<[1], [1], [0], [0], [0, 0, 1, 0], [], []>} : vector<32x16xf32>, vector<128x16xf32>, vector<32x128xf32> -> vector<32x128xf32>
    %21 = vector.broadcast %1 : vector<32x1xf32> to vector<32x128xf32>
    %22 = arith.addf %20, %21 : vector<32x128xf32>
    %23 = math.tanh %22 : vector<32x128xf32>
    %24 = arith.addf %17, %23 : vector<32x128xf32>
    %c2 = arith.constant 2 : index
    %c0_15 = arith.constant 0 : index
    %c0_16 = arith.constant 0 : index
    %25 = vector.load %arg2[%c2, %c0_15, %c0_16] : memref<4x128x16xf32, #tpu.memory_space<vmem>>, vector<1x128x16xf32>
    %26 = vector.shape_cast %25 : vector<1x128x16xf32> to vector<128x16xf32>
    %cst_17 = arith.constant dense<0.000000e+00> : vector<32x128xf32>
    %27 = tpu.matmul %0, %26, %cst_17 {dimension_numbers = #tpu.dot_dimension_numbers<[1], [1], [0], [0], [0, 0, 1, 0], [], []>} : vector<32x16xf32>, vector<128x16xf32>, vector<32x128xf32> -> vector<32x128xf32>
    %28 = vector.broadcast %1 : vector<32x1xf32> to vector<32x128xf32>
    %29 = arith.addf %27, %28 : vector<32x128xf32>
    %30 = math.tanh %29 : vector<32x128xf32>
    %31 = arith.addf %24, %30 : vector<32x128xf32>
    %c3 = arith.constant 3 : index
    %c0_18 = arith.constant 0 : index
    %c0_19 = arith.constant 0 : index
    %32 = vector.load %arg2[%c3, %c0_18, %c0_19] : memref<4x128x16xf32, #tpu.memory_space<vmem>>, vector<1x128x16xf32>
    %33 = vector.shape_cast %32 : vector<1x128x16xf32> to vector<128x16xf32>
    %cst_20 = arith.constant dense<0.000000e+00> : vector<32x128xf32>
    %34 = tpu.matmul %0, %33, %cst_20 {dimension_numbers = #tpu.dot_dimension_numbers<[1], [1], [0], [0], [0, 0, 1, 0], [], []>} : vector<32x16xf32>, vector<128x16xf32>, vector<32x128xf32> -> vector<32x128xf32>
    %35 = vector.broadcast %1 : vector<32x1xf32> to vector<32x128xf32>
    %36 = arith.addf %34, %35 : vector<32x128xf32>
    %37 = math.tanh %36 : vector<32x128xf32>
    %38 = arith.addf %31, %37 : vector<32x128xf32>
    %39 = vector.broadcast %2 : vector<32x1xf32> to vector<32x128xf32>
    %40 = arith.mulf %38, %39 : vector<32x128xf32>
    %cst_21 = arith.constant dense<0.000000e+00> : vector<128xf32>
    %41 = vector.multi_reduction <add>, %40, %cst_21 [0] : vector<32x128xf32> to vector<128xf32>
    %42 = vector.shape_cast %41 : vector<128xf32> to vector<1x128xf32>
    %cst_22 = arith.constant 2.500000e-01 : f32
    %43 = vector.broadcast %cst_22 : f32 to vector<1x128xf32>
    %44 = arith.mulf %42, %43 : vector<1x128xf32>
    %45 = arith.subf %11, %44 : vector<1x128xf32>
    %46 = arith.mulf %45, %45 : vector<1x128xf32>
    %cst_23 = arith.constant 5.000000e-01 : f32
    %47 = vector.broadcast %cst_23 : f32 to vector<1x128xf32>
    %48 = arith.mulf %47, %46 : vector<1x128xf32>
    %c0_24 = arith.constant 0 : index
    %c0_25 = arith.constant 0 : index
    %49 = vector.load %arg6[%c0_24, %c0_25] : memref<1x128xf32, #tpu.memory_space<vmem>>, vector<1x128xf32>
    tpu.vector_store %arg6[%c0_24, %c0_25], %48 {strides = array<i32>} : memref<1x128xf32, #tpu.memory_space<vmem>>, vector<1x128xf32>,
    return
  }
  func.func @transform_0(%arg0: i32) -> (i32, i32) {
    %c0_i32 = arith.constant 0 : i32
    %c0_i32_0 = arith.constant 0 : i32
    return %arg0, %c0_i32 : i32, i32
  }
  func.func @transform_1(%arg0: i32) -> (i32, i32, i32) {
    %c0_i32 = arith.constant 0 : i32
    %c0_i32_0 = arith.constant 0 : i32
    %c0_i32_1 = arith.constant 0 : i32
    return %c0_i32, %arg0, %c0_i32_0 : i32, i32, i32
  }
  func.func @transform_2(%arg0: i32) -> (i32, i32) {
    %c0_i32 = arith.constant 0 : i32
    %c0_i32_0 = arith.constant 0 : i32
    %c0_i32_1 = arith.constant 0 : i32
    return %c0_i32, %c0_i32_0 : i32, i32
  }
  func.func @transform_3(%arg0: i32) -> (i32, i32) {
    %c0_i32 = arith.constant 0 : i32
    %c0_i32_0 = arith.constant 0 : i32
    %c0_i32_1 = arith.constant 0 : i32
    return %c0_i32, %c0_i32_0 : i32, i32
  }
  func.func @transform_4(%arg0: i32) -> (i32, i32) {
    %c0_i32 = arith.constant 0 : i32
    %c0_i32_0 = arith.constant 0 : i32
    %c0_i32_1 = arith.constant 0 : i32
    return %c0_i32, %c0_i32_0 : i32, i32
  }
  func.func @transform_5(%arg0: i32) -> (i32, i32) {
    %c0_i32 = arith.constant 0 : i32
    %c0_i32_0 = arith.constant 0 : i32
    return %c0_i32, %arg0 : i32, i32
  }
}

</mosaic_0001>

<llo_original>
// kernel: tpu_custom_call.1
$region0: #{tpu_custom_call.1}
  #allocation0 [shape = 'u32[]', space=smem, size = 0x4, offset = 0x4, fixed_abs, tag = 'smem constant byte address 0x4 - core index']
  #allocation1 [shape = 'u32[144,128]{1,0:T(1,128)}', space=vmem, size = 0x12000, scoped, tag = 'internal scratch']
  %s0 = inlined_call_operand.vmem [shape: f32[128,16], index: 0, kind: input, shape index: {}]
  %s1 = inlined_call_operand.vmem [shape: f32[4,128,16], index: 1, kind: input, shape index: {}]
  %s2 = inlined_call_operand.vmem [shape: f32[32,16], index: 2, kind: input, shape index: {}]
  %s3 = inlined_call_operand.vmem [shape: f32[32,1], index: 3, kind: input, shape index: {}]
  %s4 = inlined_call_operand.vmem [shape: f32[32,1], index: 4, kind: input, shape index: {}]
  %s5 = inlined_call_operand.hbm [shape: f32[1,128], index: 5, kind: output, shape index: {}]
  %s6 = sld [smem:[#allocation0]]
  $region30: #{tpu_custom_call.1} parent=0
    _
  %s8 = ssub.s32 1, %s6
  %s9 = scalar_select 0, %s8, %s6
  $region1: #{tpu_custom_call.1} parent=0
    #allocation2 [shape = 'u8[512]{0}', space=vmem, size = 0x400, scoped, tag = 'output window, operand 0, single buffered']
    #allocation3 [shape = 's32[1]{0}', space=sflag, size = 0x4, scoped, tag = 'scoped memory for tpu_custom_call.1']
    %10 = vsyncpa [#allocation3], 0
    // Predicated region
    $region2: #{tpu_custom_call.1} parent=1 // pred_check
      _
    $region3: #{tpu_custom_call.1} parent=1 // pred_check_branch
      %12 = sbr.rel (0) target = $region5
    $region4: #{tpu_custom_call.1} parent=1 // pred_region
      _
    $region5: #{tpu_custom_call.1} parent=1 // pred_fallthru
      _
    // Predicated region
    $region6: #{tpu_custom_call.1} parent=1 // pred_check
      _
    $region7: #{tpu_custom_call.1} parent=1 // pred_check_branch
      %14 = sbr.rel (0) target = $region9
    $region8: #{tpu_custom_call.1} parent=1 // pred_region
      _
    $region9: #{tpu_custom_call.1} parent=1 // pred_fallthru
      _
    // Predicated region
    $region10: #{tpu_custom_call.1} parent=1 // pred_check
      _
    $region11: #{tpu_custom_call.1} parent=1 // pred_check_branch
      %16 = sbr.rel (0) target = $region13
    $region12: #{tpu_custom_call.1} parent=1 // pred_region
      _
    $region13: #{tpu_custom_call.1} parent=1 // pred_fallthru
      _
    // Predicated region
    $region14: #{tpu_custom_call.1} parent=1 // pred_check
      _
    $region15: #{tpu_custom_call.1} parent=1 // pred_check_branch
      %18 = sbr.rel (0) target = $region17
    $region16: #{tpu_custom_call.1} parent=1 // pred_region
      _
    $region17: #{tpu_custom_call.1} parent=1 // pred_fallthru
      _
    // Predicated region
    $region18: #{tpu_custom_call.1} parent=1 // pred_check
      _
    $region19: #{tpu_custom_call.1} parent=1 // pred_check_branch
      %20 = sbr.rel (0) target = $region21
    $region20: #{tpu_custom_call.1} parent=1 // pred_region
      _
    $region21: #{tpu_custom_call.1} parent=1 // pred_fallthru
      _
    %v21 = vld [vmem:[%s2] sm:$0xff]
    %v22 = vld [vmem:[%s2 + $0x8] sm:$0xff]
    %v23 = vld [vmem:[%s2 + $0x10] sm:$0xff]
    %v24 = vld [vmem:[%s2 + $0x18] sm:$0xff]
    %v25 = vld [vmem:[%s3] sm:$0xff]
    %v26 = vld [vmem:[%s3 + $0x8] sm:$0xff]
    %v27 = vld [vmem:[%s3 + $0x10] sm:$0xff]
    %v28 = vld [vmem:[%s3 + $0x18] sm:$0xff]
    %v29 = vld [vmem:[%s4] sm:$0xff]
    %v30 = vld [vmem:[%s4 + $0x8] sm:$0xff]
    %v31 = vld [vmem:[%s4 + $0x10] sm:$0xff]
    %v32 = vld [vmem:[%s4 + $0x18] sm:$0xff]
    %v33 = vld [vmem:[%s0] sm:$0xff]
    %v34 = vld [vmem:[%s0 + $0x8] sm:$0xff]
    %v35 = vld [vmem:[%s0 + $0x10] sm:$0xff]
    %v36 = vld [vmem:[%s0 + $0x18] sm:$0xff]
    %v37 = vld [vmem:[%s0 + $0x20] sm:$0xff]
    %v38 = vld [vmem:[%s0 + $0x28] sm:$0xff]
    %v39 = vld [vmem:[%s0 + $0x30] sm:$0xff]
    %v40 = vld [vmem:[%s0 + $0x38] sm:$0xff]
    %v41 = vld [vmem:[%s0 + $0x40] sm:$0xff]
    %v42 = vld [vmem:[%s0 + $0x48] sm:$0xff]
    %v43 = vld [vmem:[%s0 + $0x50] sm:$0xff]
    %v44 = vld [vmem:[%s0 + $0x58] sm:$0xff]
    %v45 = vld [vmem:[%s0 + $0x60] sm:$0xff]
    %v46 = vld [vmem:[%s0 + $0x68] sm:$0xff]
    %v47 = vld [vmem:[%s0 + $0x70] sm:$0xff]
    %v48 = vld [vmem:[%s0 + $0x78] sm:$0xff]
    %50 = vset.pattern.permute.xlu0 0
    %51 = vperm.xlu0 %50, %v25
    %v52 = vpop.permute.xlu0 %51
    %55 = vset.pattern.permute.xlu0 0
    %56 = vperm.xlu0 %55, %v26
    %v57 = vpop.permute.xlu0 %56
    %60 = vset.pattern.permute.xlu0 0
    %61 = vperm.xlu0 %60, %v27
    %v62 = vpop.permute.xlu0 %61
    %65 = vset.pattern.permute.xlu0 0
    %66 = vperm.xlu0 %65, %v28
    %v67 = vpop.permute.xlu0 %66
    %vm69 = vcmask 130048
    %v71 = vsel %vm69, %v21, 0
    %v74 = vsel %vm69, %v22, 0
    %v77 = vsel %vm69, %v23, 0
    %v80 = vsel %vm69, %v24, 0
    %v83 = vsel %vm69, %v33, 0
    %v86 = vsel %vm69, %v34, 0
    %v89 = vsel %vm69, %v35, 0
    %v92 = vsel %vm69, %v36, 0
    %v95 = vsel %vm69, %v37, 0
    %v98 = vsel %vm69, %v38, 0
    %v101 = vsel %vm69, %v39, 0
    %v104 = vsel %vm69, %v40, 0
    %v107 = vsel %vm69, %v41, 0
    %v110 = vsel %vm69, %v42, 0
    %v113 = vsel %vm69, %v43, 0
    %v116 = vsel %vm69, %v44, 0
    %v119 = vsel %vm69, %v45, 0
    %v122 = vsel %vm69, %v46, 0
    %v125 = vsel %vm69, %v47, 0
    %v128 = vsel %vm69, %v48, 0
    %130 = vmatprep.subr.mxu0 0.0
    %131 = vmatpush1.xpose.msra.mxu0 %v83
    %132 = vmatprep.subr.mxu0 0.0
    %133 = vmatpush1.xpose.msra.mxu0 %v86
    %134 = vmatprep.subr.mxu0 0.0
    %135 = vmatpush1.xpose.msra.mxu0 %v89
    %136 = vmatprep.subr.mxu0 0.0
    %137 = vmatpush1.xpose.msra.mxu0 %v92
    %138 = vmatprep.subr.mxu0 0.0
    %139 = vmatpush1.xpose.msra.mxu0 %v95
    %140 = vmatprep.subr.mxu0 0.0
    %141 = vmatpush1.xpose.msra.mxu0 %v98
    %142 = vmatprep.subr.mxu0 0.0
    %143 = vmatpush1.xpose.msra.mxu0 %v101
    %144 = vmatprep.subr.mxu0 0.0
    %145 = vmatpush1.xpose.msra.mxu0 %v104
    %146 = vmatprep.subr.mxu0 0.0
    %147 = vmatpush1.xpose.msra.mxu0 %v107
    %148 = vmatprep.subr.mxu0 0.0
    %149 = vmatpush1.xpose.msra.mxu0 %v110
    %150 = vmatprep.subr.mxu0 0.0
    %151 = vmatpush1.xpose.msra.mxu0 %v113
    %152 = vmatprep.subr.mxu0 0.0
    %153 = vmatpush1.xpose.msra.mxu0 %v116
    %154 = vmatprep.subr.mxu0 0.0
    %155 = vmatpush1.xpose.msra.mxu0 %v119
    %156 = vmatprep.subr.mxu0 0.0
    %157 = vmatpush1.xpose.msra.mxu0 %v122
    %158 = vmatprep.subr.mxu0 0.0
    %159 = vmatpush1.xpose.msra.mxu0 %v125
    %160 = vmatprep.subr.mxu0 0.0
    %161 = vmatpush1.xpose.msra.mxu0 %v128
    %162 = vmatprep.subr.mxu0 0.0
    %163 = vmatpush1.xpose.msra.mxu0 0.0
    %164 = vmatprep.subr.mxu0 0.0
    %165 = vmatpush1.xpose.msra.mxu0 0.0
    %166 = vmatprep.subr.mxu0 0.0
    %167 = vmatpush1.xpose.msra.mxu0 0.0
    %168 = vmatprep.subr.mxu0 0.0
    %169 = vmatpush1.xpose.msra.mxu0 0.0
    %170 = vmatprep.subr.mxu0 0.0
    %171 = vmatpush1.xpose.msra.mxu0 0.0
    %172 = vmatprep.subr.mxu0 0.0
    %173 = vmatpush1.xpose.msra.mxu0 0.0
    %174 = vmatprep.subr.mxu0 0.0
    %175 = vmatpush1.xpose.msra.mxu0 0.0
    %176 = vmatprep.subr.mxu0 0.0
    %177 = vmatpush1.xpose.msra.mxu0 0.0
    %178 = vmatprep.subr.mxu0 0.0
    %179 = vmatpush1.xpose.msra.mxu0 0.0
    %180 = vmatprep.subr.mxu0 0.0
    %181 = vmatpush1.xpose.msra.mxu0 0.0
    %182 = vmatprep.subr.mxu0 0.0
    %183 = vmatpush1.xpose.msra.mxu0 0.0
    %184 = vmatprep.subr.mxu0 0.0
    %185 = vmatpush1.xpose.msra.mxu0 0.0
    %186 = vmatprep.subr.mxu0 0.0
    %187 = vmatpush1.xpose.msra.mxu0 0.0
    %188 = vmatprep.subr.mxu0 0.0
    %189 = vmatpush1.xpose.msra.mxu0 0.0
    %190 = vmatprep.subr.mxu0 0.0
    %191 = vmatpush1.xpose.msra.mxu0 0.0
    %192 = vmatprep.subr.mxu0 0.0
    %193 = vmatpush1.xpose.msra.mxu0 0.0
    %194 = vmatprep.mubr.f32.mxu0 0.0
    %195 = vmatmul.mubr.f32.gmra.mrb[0].mxu0 %v71
    %v196 = vpop.f32.mrb[0].mxu0
    %v197 = vadd.f32 %v52, %v196
    %v198 = vpop.f32.mrb[0].mxu0
    %199 = vmatprep.mubr.f32.mxu0 0.0
    %200 = vmatmul.mubr.f32.gmra.mrb[0].mxu0 %v74
    %v201 = vpop.f32.mrb[0].mxu0
    %v202 = vadd.f32 %v57, %v201
    %v203 = vpop.f32.mrb[0].mxu0
    %204 = vmatprep.mubr.f32.mxu0 0.0
    %205 = vmatmul.mubr.f32.gmra.mrb[0].mxu0 %v77
    %v206 = vpop.f32.mrb[0].mxu0
    %v207 = vadd.f32 %v62, %v206
    %v208 = vpop.f32.mrb[0].mxu0
    %209 = vmatprep.mubr.f32.mxu0 0.0
    %210 = vmatmul.mubr.f32.gmra.mrb[0].mxu0 %v80
    %v211 = vpop.f32.mrb[0].mxu0
    %v212 = vadd.f32 %v67, %v211
    %v213 = vpop.f32.mrb[0].mxu0
    %214 = vdwg.mxu0
    %v215 = vtanh.pop %v197
    %v216 = vtanh.pop %v202
    %v217 = vtanh.pop %v207
    %v218 = vtanh.pop %v212
    %220 = vset.pattern.permute.xlu0 0
    %221 = vperm.xlu0 %220, %v29
    %v222 = vpop.permute.xlu0 %221
    %225 = vset.pattern.permute.xlu0 0
    %226 = vperm.xlu0 %225, %v30
    %v227 = vpop.permute.xlu0 %226
    %230 = vset.pattern.permute.xlu0 0
    %231 = vperm.xlu0 %230, %v31
    %v232 = vpop.permute.xlu0 %231
    %235 = vset.pattern.permute.xlu0 0
    %236 = vperm.xlu0 %235, %v32
    %v237 = vpop.permute.xlu0 %236
    %v239 = vmul.f32 %v215, %v222
    %v240 = vmul.f32 %v216, %v227
    %v241 = vmul.f32 %v217, %v232
    %v242 = vmul.f32 %v218, %v237
    %v243 = vadd.f32 %v239, %v240
    %v244 = vadd.f32 %v243, %v241
    %v245 = vadd.f32 %v244, %v242
    %v246 = vrot.slane %v245, 4
    %v247 = vadd.f32 %v245, %v246
    %v248 = vrot.slane %v247, 2
    %v249 = vadd.f32 %v247, %v248
    %v250 = vrot.slane %v249, 1
    %v251 = vadd.f32 %v249, %v250
    %v252 = vld [vmem:[%s1] sm:$0xff]
    %v253 = vld [vmem:[%s1 + $0x8] sm:$0xff]
    %v254 = vld [vmem:[%s1 + $0x10] sm:$0xff]
    %v255 = vld [vmem:[%s1 + $0x18] sm:$0xff]
    %v256 = vld [vmem:[%s1 + $0x20] sm:$0xff]
    %v257 = vld [vmem:[%s1 + $0x28] sm:$0xff]
    %v258 = vld [vmem:[%s1 + $0x30] sm:$0xff]
    %v259 = vld [vmem:[%s1 + $0x38] sm:$0xff]
    %v260 = vld [vmem:[%s1 + $0x40] sm:$0xff]
    %v261 = vld [vmem:[%s1 + $0x48] sm:$0xff]
    %v262 = vld [vmem:[%s1 + $0x50] sm:$0xff]
    %v263 = vld [vmem:[%s1 + $0x58] sm:$0xff]
    %v264 = vld [vmem:[%s1 + $0x60] sm:$0xff]
    %v265 = vld [vmem:[%s1 + $0x68] sm:$0xff]
    %v266 = vld [vmem:[%s1 + $0x70] sm:$0xff]
    %v267 = vld [vmem:[%s1 + $0x78] sm:$0xff]
    %v269 = vsel %vm69, %v252, 0
    %v272 = vsel %vm69, %v253, 0
    %v275 = vsel %vm69, %v254, 0
    %v278 = vsel %vm69, %v255, 0
    %v281 = vsel %vm69, %v256, 0
    %v284 = vsel %vm69, %v257, 0
    %v287 = vsel %vm69, %v258, 0
    %v290 = vsel %vm69, %v259, 0
    %v293 = vsel %vm69, %v260, 0
    %v296 = vsel %vm69, %v261, 0
    %v299 = vsel %vm69, %v262, 0
    %v302 = vsel %vm69, %v263, 0
    %v305 = vsel %vm69, %v264, 0
    %v308 = vsel %vm69, %v265, 0
    %v311 = vsel %vm69, %v266, 0
    %v314 = vsel %vm69, %v267, 0
    %316 = vmatprep.subr.mxu0 0.0
    %317 = vmatpush1.xpose.msra.mxu0 %v269
    %318 = vmatprep.subr.mxu0 0.0
    %319 = vmatpush1.xpose.msra.mxu0 %v272
    %320 = vmatprep.subr.mxu0 0.0
    %321 = vmatpush1.xpose.msra.mxu0 %v275
    %322 = vmatprep.subr.mxu0 0.0
    %323 = vmatpush1.xpose.msra.mxu0 %v278
    %324 = vmatprep.subr.mxu0 0.0
    %325 = vmatpush1.xpose.msra.mxu0 %v281
    %326 = vmatprep.subr.mxu0 0.0
    %327 = vmatpush1.xpose.msra.mxu0 %v284
    %328 = vmatprep.subr.mxu0 0.0
    %329 = vmatpush1.xpose.msra.mxu0 %v287
    %330 = vmatprep.subr.mxu0 0.0
    %331 = vmatpush1.xpose.msra.mxu0 %v290
    %332 = vmatprep.subr.mxu0 0.0
    %333 = vmatpush1.xpose.msra.mxu0 %v293
    %334 = vmatprep.subr.mxu0 0.0
    %335 = vmatpush1.xpose.msra.mxu0 %v296
    %336 = vmatprep.subr.mxu0 0.0
    %337 = vmatpush1.xpose.msra.mxu0 %v299
    %338 = vmatprep.subr.mxu0 0.0
    %339 = vmatpush1.xpose.msra.mxu0 %v302
    %340 = vmatprep.subr.mxu0 0.0
    %341 = vmatpush1.xpose.msra.mxu0 %v305
    %342 = vmatprep.subr.mxu0 0.0
    %343 = vmatpush1.xpose.msra.mxu0 %v308
    %344 = vmatprep.subr.mxu0 0.0
    %345 = vmatpush1.xpose.msra.mxu0 %v311
    %346 = vmatprep.subr.mxu0 0.0
    %347 = vmatpush1.xpose.msra.mxu0 %v314
    %348 = vmatprep.subr.mxu0 0.0
    %349 = vmatpush1.xpose.msra.mxu0 0.0
    %350 = vmatprep.subr.mxu0 0.0
    %351 = vmatpush1.xpose.msra.mxu0 0.0
    %352 = vmatprep.subr.mxu0 0.0
    %353 = vmatpush1.xpose.msra.mxu0 0.0
    %354 = vmatprep.subr.mxu0 0.0
    %355 = vmatpush1.xpose.msra.mxu0 0.0
    %356 = vmatprep.subr.mxu0 0.0
    %357 = vmatpush1.xpose.msra.mxu0 0.0
    %358 = vmatprep.subr.mxu0 0.0
    %359 = vmatpush1.xpose.msra.mxu0 0.0
    %360 = vmatprep.subr.mxu0 0.0
    %361 = vmatpush1.xpose.msra.mxu0 0.0
    %362 = vmatprep.subr.mxu0 0.0
    %363 = vmatpush1.xpose.msra.mxu0 0.0
    %364 = vmatprep.subr.mxu0 0.0
    %365 = vmatpush1.xpose.msra.mxu0 0.0
    %366 = vmatprep.subr.mxu0 0.0
    %367 = vmatpush1.xpose.msra.mxu0 0.0
    %368 = vmatprep.subr.mxu0 0.0
    %369 = vmatpush1.xpose.msra.mxu0 0.0
    %370 = vmatprep.subr.mxu0 0.0
    %371 = vmatpush1.xpose.msra.mxu0 0.0
    %372 = vmatprep.subr.mxu0 0.0
    %373 = vmatpush1.xpose.msra.mxu0 0.0
    %374 = vmatprep.subr.mxu0 0.0
    %375 = vmatpush1.xpose.msra.mxu0 0.0
    %376 = vmatprep.subr.mxu0 0.0
    %377 = vmatpush1.xpose.msra.mxu0 0.0
    %378 = vmatprep.subr.mxu0 0.0
    %379 = vmatpush1.xpose.msra.mxu0 0.0
    %380 = vmatprep.mubr.f32.mxu0 0.0
    %381 = vmatmul.mubr.f32.gmra.mrb[0].mxu0 %v71
    %v382 = vpop.f32.mrb[0].mxu0
    %v383 = vadd.f32 %v52, %v382
    %v384 = vpop.f32.mrb[0].mxu0
    %385 = vmatprep.mubr.f32.mxu0 0.0
    %386 = vmatmul.mubr.f32.gmra.mrb[0].mxu0 %v74
    %v387 = vpop.f32.mrb[0].mxu0
    %v388 = vadd.f32 %v57, %v387
    %v389 = vpop.f32.mrb[0].mxu0
    %390 = vmatprep.mubr.f32.mxu0 0.0
    %391 = vmatmul.mubr.f32.gmra.mrb[0].mxu0 %v77
    %v392 = vpop.f32.mrb[0].mxu0
    %v393 = vadd.f32 %v62, %v392
    %v394 = vpop.f32.mrb[0].mxu0
    %395 = vmatprep.mubr.f32.mxu0 0.0
    %396 = vmatmul.mubr.f32.gmra.mrb[0].mxu0 %v80
    %v397 = vpop.f32.mrb[0].mxu0
    %v398 = vadd.f32 %v67, %v397
    %v399 = vpop.f32.mrb[0].mxu0
    %400 = vdwg.mxu0
    %v401 = vtanh.pop %v383
    %v402 = vtanh.pop %v388
    %v403 = vtanh.pop %v393
    %v404 = vtanh.pop %v398
    %s405 = scalar_lea.vmem %s1, 128
    %v406 = vld [vmem:[%s405] sm:$0xff]
    %v407 = vld [vmem:[%s405 + $0x8] sm:$0xff]
    %v408 = vld [vmem:[%s405 + $0x10] sm:$0xff]
    %v409 = vld [vmem:[%s405 + $0x18] sm:$0xff]
    %v410 = vld [vmem:[%s405 + $0x20] sm:$0xff]
    %v411 = vld [vmem:[%s405 + $0x28] sm:$0xff]
    %v412 = vld [vmem:[%s405 + $0x30] sm:$0xff]
    %v413 = vld [vmem:[%s405 + $0x38] sm:$0xff]
    %v414 = vld [vmem:[%s405 + $0x40] sm:$0xff]
    %v415 = vld [vmem:[%s405 + $0x48] sm:$0xff]
    %v416 = vld [vmem:[%s405 + $0x50] sm:$0xff]
    %v417 = vld [vmem:[%s405 + $0x58] sm:$0xff]
    %v418 = vld [vmem:[%s405 + $0x60] sm:$0xff]
    %v419 = vld [vmem:[%s405 + $0x68] sm:$0xff]
    %v420 = vld [vmem:[%s405 + $0x70] sm:$0xff]
    %v421 = vld [vmem:[%s405 + $0x78] sm:$0xff]
    %v423 = vsel %vm69, %v406, 0
    %v426 = vsel %vm69, %v407, 0
    %v429 = vsel %vm69, %v408, 0
    %v432 = vsel %vm69, %v409, 0
    %v435 = vsel %vm69, %v410, 0
    %v438 = vsel %vm69, %v411, 0
    %v441 = vsel %vm69, %v412, 0
    %v444 = vsel %vm69, %v413, 0
    %v447 = vsel %vm69, %v414, 0
    %v450 = vsel %vm69, %v415, 0
    %v453 = vsel %vm69, %v416, 0
    %v456 = vsel %vm69, %v417, 0
    %v459 = vsel %vm69, %v418, 0
    %v462 = vsel %vm69, %v419, 0
    %v465 = vsel %vm69, %v420, 0
    %v468 = vsel %vm69, %v421, 0
    %470 = vmatprep.subr.mxu0 0.0
    %471 = vmatpush1.xpose.msra.mxu0 %v423
    %472 = vmatprep.subr.mxu0 0.0
    %473 = vmatpush1.xpose.msra.mxu0 %v426
    %474 = vmatprep.subr.mxu0 0.0
    %475 = vmatpush1.xpose.msra.mxu0 %v429
    %476 = vmatprep.subr.mxu0 0.0
    %477 = vmatpush1.xpose.msra.mxu0 %v432
    %478 = vmatprep.subr.mxu0 0.0
    %479 = vmatpush1.xpose.msra.mxu0 %v435
    %480 = vmatprep.subr.mxu0 0.0
    %481 = vmatpush1.xpose.msra.mxu0 %v438
    %482 = vmatprep.subr.mxu0 0.0
    %483 = vmatpush1.xpose.msra.mxu0 %v441
    %484 = vmatprep.subr.mxu0 0.0
    %485 = vmatpush1.xpose.msra.mxu0 %v444
    %486 = vmatprep.subr.mxu0 0.0
    %487 = vmatpush1.xpose.msra.mxu0 %v447
    %488 = vmatprep.subr.mxu0 0.0
    %489 = vmatpush1.xpose.msra.mxu0 %v450
    %490 = vmatprep.subr.mxu0 0.0
    %491 = vmatpush1.xpose.msra.mxu0 %v453
    %492 = vmatprep.subr.mxu0 0.0
    %493 = vmatpush1.xpose.msra.mxu0 %v456
    %494 = vmatprep.subr.mxu0 0.0
    %495 = vmatpush1.xpose.msra.mxu0 %v459
    %496 = vmatprep.subr.mxu0 0.0
    %497 = vmatpush1.xpose.msra.mxu0 %v462
    %498 = vmatprep.subr.mxu0 0.0
    %499 = vmatpush1.xpose.msra.mxu0 %v465
    %500 = vmatprep.subr.mxu0 0.0
    %501 = vmatpush1.xpose.msra.mxu0 %v468
    %502 = vmatprep.subr.mxu0 0.0
    %503 = vmatpush1.xpose.msra.mxu0 0.0
    %504 = vmatprep.subr.mxu0 0.0
    %505 = vmatpush1.xpose.msra.mxu0 0.0
    %506 = vmatprep.subr.mxu0 0.0
    %507 = vmatpush1.xpose.msra.mxu0 0.0
    %508 = vmatprep.subr.mxu0 0.0
    %509 = vmatpush1.xpose.msra.mxu0 0.0
    %510 = vmatprep.subr.mxu0 0.0
    %511 = vmatpush1.xpose.msra.mxu0 0.0
    %512 = vmatprep.subr.mxu0 0.0
    %513 = vmatpush1.xpose.msra.mxu0 0.0
    %514 = vmatprep.subr.mxu0 0.0
    %515 = vmatpush1.xpose.msra.mxu0 0.0
    %516 = vmatprep.subr.mxu0 0.0
    %517 = vmatpush1.xpose.msra.mxu0 0.0
    %518 = vmatprep.subr.mxu0 0.0
    %519 = vmatpush1.xpose.msra.mxu0 0.0
    %520 = vmatprep.subr.mxu0 0.0
    %521 = vmatpush1.xpose.msra.mxu0 0.0
    %522 = vmatprep.subr.mxu0 0.0
    %523 = vmatpush1.xpose.msra.mxu0 0.0
    %524 = vmatprep.subr.mxu0 0.0
    %525 = vmatpush1.xpose.msra.mxu0 0.0
    %526 = vmatprep.subr.mxu0 0.0
    %527 = vmatpush1.xpose.msra.mxu0 0.0
    %528 = vmatprep.subr.mxu0 0.0
    %529 = vmatpush1.xpose.msra.mxu0 0.0
    %530 = vmatprep.subr.mxu0 0.0
    %531 = vmatpush1.xpose.msra.mxu0 0.0
    %532 = vmatprep.subr.mxu0 0.0
    %533 = vmatpush1.xpose.msra.mxu0 0.0
    %534 = vmatprep.mubr.f32.mxu0 0.0
    %535 = vmatmul.mubr.f32.gmra.mrb[0].mxu0 %v71
    %v536 = vpop.f32.mrb[0].mxu0
    %v537 = vadd.f32 %v52, %v536
    %v538 = vpop.f32.mrb[0].mxu0
    %539 = vmatprep.mubr.f32.mxu0 0.0
    %540 = vmatmul.mubr.f32.gmra.mrb[0].mxu0 %v74
    %v541 = vpop.f32.mrb[0].mxu0
    %v542 = vadd.f32 %v57, %v541
    %v543 = vpop.f32.mrb[0].mxu0
    %544 = vmatprep.mubr.f32.mxu0 0.0
    %545 = vmatmul.mubr.f32.gmra.mrb[0].mxu0 %v77
    %v546 = vpop.f32.mrb[0].mxu0
    %v547 = vadd.f32 %v62, %v546
    %v548 = vpop.f32.mrb[0].mxu0
    %549 = vmatprep.mubr.f32.mxu0 0.0
    %550 = vmatmul.mubr.f32.gmra.mrb[0].mxu0 %v80
    %v551 = vpop.f32.mrb[0].mxu0
    %v552 = vadd.f32 %v67, %v551
    %v553 = vpop.f32.mrb[0].mxu0
    %554 = vdwg.mxu0
    %v555 = vtanh.pop %v537
    %v556 = vtanh.pop %v542
    %v557 = vtanh.pop %v547
    %v558 = vtanh.pop %v552
    %v559 = vadd.f32 %v401, %v555
    %v560 = vadd.f32 %v402, %v556
    %v561 = vadd.f32 %v403, %v557
    %v562 = vadd.f32 %v404, %v558
    %s563 = scalar_lea.vmem %s1, 256
    %v564 = vld [vmem:[%s563] sm:$0xff]
    %v565 = vld [vmem:[%s563 + $0x8] sm:$0xff]
    %v566 = vld [vmem:[%s563 + $0x10] sm:$0xff]
    %v567 = vld [vmem:[%s563 + $0x18] sm:$0xff]
    %v568 = vld [vmem:[%s563 + $0x20] sm:$0xff]
    %v569 = vld [vmem:[%s563 + $0x28] sm:$0xff]
    %v570 = vld [vmem:[%s563 + $0x30] sm:$0xff]
    %v571 = vld [vmem:[%s563 + $0x38] sm:$0xff]
    %v572 = vld [vmem:[%s563 + $0x40] sm:$0xff]
    %v573 = vld [vmem:[%s563 + $0x48] sm:$0xff]
    %v574 = vld [vmem:[%s563 + $0x50] sm:$0xff]
    %v575 = vld [vmem:[%s563 + $0x58] sm:$0xff]
    %v576 = vld [vmem:[%s563 + $0x60] sm:$0xff]
    %v577 = vld [vmem:[%s563 + $0x68] sm:$0xff]
    %v578 = vld [vmem:[%s563 + $0x70] sm:$0xff]
    %v579 = vld [vmem:[%s563 + $0x78] sm:$0xff]
    %v581 = vsel %vm69, %v564, 0
    %v584 = vsel %vm69, %v565, 0
    %v587 = vsel %vm69, %v566, 0
    %v590 = vsel %vm69, %v567, 0
    %v593 = vsel %vm69, %v568, 0
    %v596 = vsel %vm69, %v569, 0
    %v599 = vsel %vm69, %v570, 0
    %v602 = vsel %vm69, %v571, 0
    %v605 = vsel %vm69, %v572, 0
    %v608 = vsel %vm69, %v573, 0
    %v611 = vsel %vm69, %v574, 0
    %v614 = vsel %vm69, %v575, 0
    %v617 = vsel %vm69, %v576, 0
    %v620 = vsel %vm69, %v577, 0
    %v623 = vsel %vm69, %v578, 0
    %v626 = vsel %vm69, %v579, 0
    %628 = vmatprep.subr.mxu0 0.0
    %629 = vmatpush1.xpose.msra.mxu0 %v581
    %630 = vmatprep.subr.mxu0 0.0
    %631 = vmatpush1.xpose.msra.mxu0 %v584
    %632 = vmatprep.subr.mxu0 0.0
    %633 = vmatpush1.xpose.msra.mxu0 %v587
    %634 = vmatprep.subr.mxu0 0.0
    %635 = vmatpush1.xpose.msra.mxu0 %v590
    %636 = vmatprep.subr.mxu0 0.0
    %637 = vmatpush1.xpose.msra.mxu0 %v593
    %638 = vmatprep.subr.mxu0 0.0
    %639 = vmatpush1.xpose.msra.mxu0 %v596
    %640 = vmatprep.subr.mxu0 0.0
    %641 = vmatpush1.xpose.msra.mxu0 %v599
    %642 = vmatprep.subr.mxu0 0.0
    %643 = vmatpush1.xpose.msra.mxu0 %v602
    %644 = vmatprep.subr.mxu0 0.0
    %645 = vmatpush1.xpose.msra.mxu0 %v605
    %646 = vmatprep.subr.mxu0 0.0
    %647 = vmatpush1.xpose.msra.mxu0 %v608
    %648 = vmatprep.subr.mxu0 0.0
    %649 = vmatpush1.xpose.msra.mxu0 %v611
    %650 = vmatprep.subr.mxu0 0.0
    %651 = vmatpush1.xpose.msra.mxu0 %v614
    %652 = vmatprep.subr.mxu0 0.0
    %653 = vmatpush1.xpose.msra.mxu0 %v617
    %654 = vmatprep.subr.mxu0 0.0
    %655 = vmatpush1.xpose.msra.mxu0 %v620
    %656 = vmatprep.subr.mxu0 0.0
    %657 = vmatpush1.xpose.msra.mxu0 %v623
    %658 = vmatprep.subr.mxu0 0.0
    %659 = vmatpush1.xpose.msra.mxu0 %v626
    %660 = vmatprep.subr.mxu0 0.0
    %661 = vmatpush1.xpose.msra.mxu0 0.0
    %662 = vmatprep.subr.mxu0 0.0
    %663 = vmatpush1.xpose.msra.mxu0 0.0
    %664 = vmatprep.subr.mxu0 0.0
    %665 = vmatpush1.xpose.msra.mxu0 0.0
    %666 = vmatprep.subr.mxu0 0.0
    %667 = vmatpush1.xpose.msra.mxu0 0.0
    %668 = vmatprep.subr.mxu0 0.0
    %669 = vmatpush1.xpose.msra.mxu0 0.0
    %670 = vmatprep.subr.mxu0 0.0
    %671 = vmatpush1.xpose.msra.mxu0 0.0
    %672 = vmatprep.subr.mxu0 0.0
    %673 = vmatpush1.xpose.msra.mxu0 0.0
    %674 = vmatprep.subr.mxu0 0.0
    %675 = vmatpush1.xpose.msra.mxu0 0.0
    %676 = vmatprep.subr.mxu0 0.0
    %677 = vmatpush1.xpose.msra.mxu0 0.0
    %678 = vmatprep.subr.mxu0 0.0
    %679 = vmatpush1.xpose.msra.mxu0 0.0
    %680 = vmatprep.subr.mxu0 0.0
    %681 = vmatpush1.xpose.msra.mxu0 0.0
    %682 = vmatprep.subr.mxu0 0.0
    %683 = vmatpush1.xpose.msra.mxu0 0.0
    %684 = vmatprep.subr.mxu0 0.0
    %685 = vmatpush1.xpose.msra.mxu0 0.0
    %686 = vmatprep.subr.mxu0 0.0
    %687 = vmatpush1.xpose.msra.mxu0 0.0
    %688 = vmatprep.subr.mxu0 0.0
    %689 = vmatpush1.xpose.msra.mxu0 0.0
    %690 = vmatprep.subr.mxu0 0.0
    %691 = vmatpush1.xpose.msra.mxu0 0.0
    %692 = vmatprep.mubr.f32.mxu0 0.0
    %693 = vmatmul.mubr.f32.gmra.mrb[0].mxu0 %v71
    %v694 = vpop.f32.mrb[0].mxu0
    %v695 = vadd.f32 %v52, %v694
    %v696 = vpop.f32.mrb[0].mxu0
    %697 = vmatprep.mubr.f32.mxu0 0.0
    %698 = vmatmul.mubr.f32.gmra.mrb[0].mxu0 %v74
    %v699 = vpop.f32.mrb[0].mxu0
    %v700 = vadd.f32 %v57, %v699
    %v701 = vpop.f32.mrb[0].mxu0
    %702 = vmatprep.mubr.f32.mxu0 0.0
    %703 = vmatmul.mubr.f32.gmra.mrb[0].mxu0 %v77
    %v704 = vpop.f32.mrb[0].mxu0
    %v705 = vadd.f32 %v62, %v704
    %v706 = vpop.f32.mrb[0].mxu0
    %707 = vmatprep.mubr.f32.mxu0 0.0
    %708 = vmatmul.mubr.f32.gmra.mrb[0].mxu0 %v80
    %v709 = vpop.f32.mrb[0].mxu0
    %v710 = vadd.f32 %v67, %v709
    %v711 = vpop.f32.mrb[0].mxu0
    %712 = vdwg.mxu0
    %v713 = vtanh.pop %v695
    %v714 = vtanh.pop %v700
    %v715 = vtanh.pop %v705
    %v716 = vtanh.pop %v710
    %v717 = vadd.f32 %v559, %v713
    %v718 = vadd.f32 %v560, %v714
    %v719 = vadd.f32 %v561, %v715
    %v720 = vadd.f32 %v562, %v716
    %s721 = scalar_lea.vmem %s1, 384
    %v722 = vld [vmem:[%s721] sm:$0xff]
    %v723 = vld [vmem:[%s721 + $0x8] sm:$0xff]
    %v724 = vld [vmem:[%s721 + $0x10] sm:$0xff]
    %v725 = vld [vmem:[%s721 + $0x18] sm:$0xff]
    %v726 = vld [vmem:[%s721 + $0x20] sm:$0xff]
    %v727 = vld [vmem:[%s721 + $0x28] sm:$0xff]
    %v728 = vld [vmem:[%s721 + $0x30] sm:$0xff]
    %v729 = vld [vmem:[%s721 + $0x38] sm:$0xff]
    %v730 = vld [vmem:[%s721 + $0x40] sm:$0xff]
    %v731 = vld [vmem:[%s721 + $0x48] sm:$0xff]
    %v732 = vld [vmem:[%s721 + $0x50] sm:$0xff]
    %v733 = vld [vmem:[%s721 + $0x58] sm:$0xff]
    %v734 = vld [vmem:[%s721 + $0x60] sm:$0xff]
    %v735 = vld [vmem:[%s721 + $0x68] sm:$0xff]
    %v736 = vld [vmem:[%s721 + $0x70] sm:$0xff]
    %v737 = vld [vmem:[%s721 + $0x78] sm:$0xff]
    %v739 = vsel %vm69, %v722, 0
    %v742 = vsel %vm69, %v723, 0
    %v745 = vsel %vm69, %v724, 0
    %v748 = vsel %vm69, %v725, 0
    %v751 = vsel %vm69, %v726, 0
    %v754 = vsel %vm69, %v727, 0
    %v757 = vsel %vm69, %v728, 0
    %v760 = vsel %vm69, %v729, 0
    %v763 = vsel %vm69, %v730, 0
    %v766 = vsel %vm69, %v731, 0
    %v769 = vsel %vm69, %v732, 0
    %v772 = vsel %vm69, %v733, 0
    %v775 = vsel %vm69, %v734, 0
    %v778 = vsel %vm69, %v735, 0
    %v781 = vsel %vm69, %v736, 0
    %v784 = vsel %vm69, %v737, 0
    %786 = vmatprep.subr.mxu0 0.0
    %787 = vmatpush1.xpose.msra.mxu0 %v739
    %788 = vmatprep.subr.mxu0 0.0
    %789 = vmatpush1.xpose.msra.mxu0 %v742
    %790 = vmatprep.subr.mxu0 0.0
    %791 = vmatpush1.xpose.msra.mxu0 %v745
    %792 = vmatprep.subr.mxu0 0.0
    %793 = vmatpush1.xpose.msra.mxu0 %v748
    %794 = vmatprep.subr.mxu0 0.0
    %795 = vmatpush1.xpose.msra.mxu0 %v751
    %796 = vmatprep.subr.mxu0 0.0
    %797 = vmatpush1.xpose.msra.mxu0 %v754
    %798 = vmatprep.subr.mxu0 0.0
    %799 = vmatpush1.xpose.msra.mxu0 %v757
    %800 = vmatprep.subr.mxu0 0.0
    %801 = vmatpush1.xpose.msra.mxu0 %v760
    %802 = vmatprep.subr.mxu0 0.0
    %803 = vmatpush1.xpose.msra.mxu0 %v763
    %804 = vmatprep.subr.mxu0 0.0
    %805 = vmatpush1.xpose.msra.mxu0 %v766
    %806 = vmatprep.subr.mxu0 0.0
    %807 = vmatpush1.xpose.msra.mxu0 %v769
    %808 = vmatprep.subr.mxu0 0.0
    %809 = vmatpush1.xpose.msra.mxu0 %v772
    %810 = vmatprep.subr.mxu0 0.0
    %811 = vmatpush1.xpose.msra.mxu0 %v775
    %812 = vmatprep.subr.mxu0 0.0
    %813 = vmatpush1.xpose.msra.mxu0 %v778
    %814 = vmatprep.subr.mxu0 0.0
    %815 = vmatpush1.xpose.msra.mxu0 %v781
    %816 = vmatprep.subr.mxu0 0.0
    %817 = vmatpush1.xpose.msra.mxu0 %v784
    %818 = vmatprep.subr.mxu0 0.0
    %819 = vmatpush1.xpose.msra.mxu0 0.0
    %820 = vmatprep.subr.mxu0 0.0
    %821 = vmatpush1.xpose.msra.mxu0 0.0
    %822 = vmatprep.subr.mxu0 0.0
    %823 = vmatpush1.xpose.msra.mxu0 0.0
    %824 = vmatprep.subr.mxu0 0.0
    %825 = vmatpush1.xpose.msra.mxu0 0.0
    %826 = vmatprep.subr.mxu0 0.0
    %827 = vmatpush1.xpose.msra.mxu0 0.0
    %828 = vmatprep.subr.mxu0 0.0
    %829 = vmatpush1.xpose.msra.mxu0 0.0
    %830 = vmatprep.subr.mxu0 0.0
    %831 = vmatpush1.xpose.msra.mxu0 0.0
    %832 = vmatprep.subr.mxu0 0.0
    %833 = vmatpush1.xpose.msra.mxu0 0.0
    %834 = vmatprep.subr.mxu0 0.0
    %835 = vmatpush1.xpose.msra.mxu0 0.0
    %836 = vmatprep.subr.mxu0 0.0
    %837 = vmatpush1.xpose.msra.mxu0 0.0
    %838 = vmatprep.subr.mxu0 0.0
    %839 = vmatpush1.xpose.msra.mxu0 0.0
    %840 = vmatprep.subr.mxu0 0.0
    %841 = vmatpush1.xpose.msra.mxu0 0.0
    %842 = vmatprep.subr.mxu0 0.0
    %843 = vmatpush1.xpose.msra.mxu0 0.0
    %844 = vmatprep.subr.mxu0 0.0
    %845 = vmatpush1.xpose.msra.mxu0 0.0
    %846 = vmatprep.subr.mxu0 0.0
    %847 = vmatpush1.xpose.msra.mxu0 0.0
    %848 = vmatprep.subr.mxu0 0.0
    %849 = vmatpush1.xpose.msra.mxu0 0.0
    %850 = vmatprep.mubr.f32.mxu0 0.0
    %851 = vmatmul.mubr.f32.gmra.mrb[0].mxu0 %v71
    %v852 = vpop.f32.mrb[0].mxu0
    %v853 = vadd.f32 %v52, %v852
    %v854 = vpop.f32.mrb[0].mxu0
    %855 = vmatprep.mubr.f32.mxu0 0.0
    %856 = vmatmul.mubr.f32.gmra.mrb[0].mxu0 %v74
    %v857 = vpop.f32.mrb[0].mxu0
    %v858 = vadd.f32 %v57, %v857
    %v859 = vpop.f32.mrb[0].mxu0
    %860 = vmatprep.mubr.f32.mxu0 0.0
    %861 = vmatmul.mubr.f32.gmra.mrb[0].mxu0 %v77
    %v862 = vpop.f32.mrb[0].mxu0
    %v863 = vadd.f32 %v62, %v862
    %v864 = vpop.f32.mrb[0].mxu0
    %865 = vmatprep.mubr.f32.mxu0 0.0
    %866 = vmatmul.mubr.f32.gmra.mrb[0].mxu0 %v80
    %v867 = vpop.f32.mrb[0].mxu0
    %v868 = vadd.f32 %v67, %v867
    %v869 = vpop.f32.mrb[0].mxu0
    %870 = vdwg.mxu0
    %v871 = vtanh.pop %v853
    %v872 = vtanh.pop %v858
    %v873 = vtanh.pop %v863
    %v874 = vtanh.pop %v868
    %v875 = vadd.f32 %v717, %v871
    %v876 = vadd.f32 %v718, %v872
    %v877 = vadd.f32 %v719, %v873
    %v878 = vadd.f32 %v720, %v874
    %v879 = vmul.f32 %v875, %v222
    %v880 = vmul.f32 %v876, %v227
    %v881 = vmul.f32 %v877, %v232
    %v882 = vmul.f32 %v878, %v237
    %v883 = vadd.f32 %v879, %v880
    %v884 = vadd.f32 %v883, %v881
    %v885 = vadd.f32 %v884, %v882
    %v886 = vrot.slane %v885, 4
    %v887 = vadd.f32 %v885, %v886
    %v888 = vrot.slane %v887, 2
    %v889 = vadd.f32 %v887, %v888
    %v890 = vrot.slane %v889, 1
    %v891 = vadd.f32 %v889, %v890
    %v892 = vmul.f32 %v891, 0.25
    %v893 = vsub.f32 %v251, %v892
    %v894 = vmul.f32 %v893, %v893
    %v895 = vmul.f32 %v894, 0.5
    %896 = vst [vmem:[#allocation2] sm:$0x1] %v895
    // Predicated region
    $region22: #{tpu_custom_call.1} parent=1 // pred_check
      _
    $region23: #{tpu_custom_call.1} parent=1 // pred_check_branch
      %898 = sbr.rel (0) target = $region25
    $region24: #{tpu_custom_call.1} parent=1 // pred_region
      %s900 = ssub.s32 16, 16
      %901 = vsyncadd [#allocation3], %s900
      %s903 = sshll.u32 [#allocation2], 4
      %s904 = int_to_ptr.vmem [resolvable:$true] %s903
      %906 = dma.vmem_to_hbm [thread:$0]  %s904, 16, %s5, [#allocation3]
    $region25: #{tpu_custom_call.1} parent=1 // pred_fallthru
      _
    // Predicated region
    $region26: #{tpu_custom_call.1} parent=1 // pred_check
      _
    $region27: #{tpu_custom_call.1} parent=1 // pred_check_branch
      %908 = sbr.rel (0) target = $region29
    $region28: #{tpu_custom_call.1} parent=1 // pred_region
      %909 = dma.done [#allocation3], 16
    $region29: #{tpu_custom_call.1} parent=1 // pred_fallthru
      _
    %910 = vsyncpa [#allocation3], 1

</llo_original>
